<compile_context>
chip_gen: v7x
topology: tpu7x:2x2x1
jax: 0.10.0
libtpu: 0.0.40
codegen_flags: <defaults>
</compile_context>

<pallas_src>
import functools

import jax
import jax.numpy as jnp
from jax.experimental import pallas as pl
from jax.experimental.pallas import tpu as pltpu


def _round_up(v, m):
    return -(-v // m) * m


def _focal_loss_kernel(*refs, gamma, has_alpha, hw, t_hw):
    # refs: x_ref (1, C, T) logits, t_ref (1, 1, T) int8/int32 targets,
    #       [alpha_ref (C, 1) f32], out_ref (1, 1, 1, 1) partial sum.
    if has_alpha:
        x_ref, t_ref, alpha_ref, out_ref = refs
    else:
        x_ref, t_ref, out_ref = refs

    x = x_ref[0]                                   # (C, T) logits
    if x.dtype != jnp.float32:                     # skip no-op cast for f32 inputs
        x = x.astype(jnp.float32)
    t = t_ref[0].astype(jnp.int32)                 # (1, T) targets (upcast in-kernel)

    # Stable log-softmax pieces along the class (sublane) axis; the full
    # log-softmax matrix is never materialized.
    m = jnp.max(x, axis=0, keepdims=True)          # (1, T)
    z = x - m                                      # (C, T)
    lse = jnp.log(jnp.sum(jnp.exp(z), axis=0, keepdims=True))   # (1, T)

    # Gather z[target] with a one-hot compare; log_pt = z[target] - lse.
    cls = jax.lax.broadcasted_iota(jnp.int32, x.shape, 0)        # (C, T)
    sel = cls == t                                               # (C, T)
    z_t = jnp.sum(jnp.where(sel, z, 0.0), axis=0, keepdims=True)
    log_pt = z_t - lse                             # (1, T)
    pt = jnp.exp(log_pt)

    if has_alpha:
        # alpha[target] via the same one-hot mask (alpha (C,1) broadcasts on T).
        at = jnp.sum(jnp.where(sel, alpha_ref[...], 0.0), axis=0, keepdims=True)
        log_pt = log_pt * at

    g = float(gamma)
    if g == 0.0:                                   # focal factor == 1
        loss = -log_pt
    else:
        one_minus_pt = 1.0 - pt
        if g.is_integer() and 0 < g <= 8:          # VALU multiplies, not EUP pow
            focal = one_minus_pt
            for _ in range(int(g) - 1):
                focal = focal * one_minus_pt
        else:
            focal = jnp.power(one_minus_pt, g)
        loss = -focal * log_pt                     # (1, T)

    if hw % t_hw != 0:
        # Ragged last tile: zero the lanes past the end of the spatial axis.
        pos = pl.program_id(1) * t_hw + jax.lax.broadcasted_iota(
            jnp.int32, loss.shape, 1)
        loss = jnp.where(pos < hw, loss, 0.0)

    out_ref[...] = jnp.sum(loss).reshape(1, 1, 1, 1)


def _pick_tile_hw(hw, c_pad, n, target_bytes):
    """Spatial (lane) tile: multiple of 128 (or full extent), sized on padded C."""
    max_t = max(128, (target_bytes // (4 * max(c_pad, 1))) // 128 * 128)
    t = hw if hw <= max_t else max_t
    if n == 1 and t >= hw and hw > 128:
        # Keep >= 2 grid cells so a 2-TensorCore chip (v7x) can shard the grid.
        t = max(128, _round_up(-(-hw // 2), 128))
    return t


def focal_loss(x, target, *, gamma=0.0, alpha=None, size_average=True,
               block_bytes=4 << 20, vmem_limit_bytes=48 << 20):
    """x: (N, C, H, W) float (f32 or bf16), target: (N, H, W) int. Scalar loss."""
    n, c = x.shape[0], x.shape[1]
    hw = 1
    for d in x.shape[2:]:
        hw *= d

    # Free reshapes only — no transpose, no extra HBM pass over the logits.
    x3 = x.reshape(n, c, hw)
    tgt_dtype = jnp.int8 if c <= 127 else jnp.int32   # shrink the target stream
    t3 = target.reshape(n, 1, hw).astype(tgt_dtype)

    has_alpha = alpha is not None
    if alpha is None:
        alpha_vec = None
    elif isinstance(alpha, (float, int)) and not isinstance(alpha, bool):
        # PyTorch builds [alpha, 1 - alpha]; its gather is only defined for C == 2.
        a = jnp.ones((c,), dtype=jnp.float32)
        a = a.at[0].set(float(alpha))
        if c > 1:
            a = a.at[1].set(1.0 - float(alpha))
        # TODO(synk): scalar alpha with targets >= 2 is an error in PyTorch;
        # classes >= 2 get weight 1.0 here instead of faking an undefined gather.
        alpha_vec = a.reshape(c, 1)
    else:
        alpha_vec = jnp.asarray(alpha, dtype=jnp.float32).reshape(c, 1)

    c_pad = _round_up(c, 8)               # f32 temporaries pad C to 8 sublanes
    t_hw = _pick_tile_hw(hw, c_pad, n, block_bytes)
    ghw = pl.cdiv(hw, t_hw)
    grid = (n, ghw)

    kernel = functools.partial(_focal_loss_kernel, gamma=float(gamma),
                               has_alpha=has_alpha, hw=hw, t_hw=t_hw)

    in_specs = [
        pl.BlockSpec((1, c, t_hw), lambda i, j: (i, 0, j)),   # logits tile
        pl.BlockSpec((1, 1, t_hw), lambda i, j: (i, 0, j)),   # targets tile
    ]
    args = [x3, t3]
    if has_alpha:
        in_specs.append(pl.BlockSpec((c, 1), lambda i, j: (0, 0)))  # resident alpha
        args.append(alpha_vec)

    x_bytes = x3.size * x3.dtype.itemsize
    t_bytes = t3.size * t3.dtype.itemsize
    cost = pl.CostEstimate(
        flops=int(10 * n * c * hw),
        transcendentals=int(n * (c + 2) * hw),
        bytes_accessed=int(x_bytes + t_bytes + n * ghw * 4),
    )

    partials = pl.pallas_call(
        kernel,
        out_shape=jax.ShapeDtypeStruct((n, ghw, 1, 1), jnp.float32),
        grid_spec=pltpu.PrefetchScalarGridSpec(
            num_scalar_prefetch=0,
            grid=grid,
            in_specs=in_specs,
            out_specs=pl.BlockSpec((1, 1, 1, 1), lambda i, j: (i, j, 0, 0)),
        ),
        compiler_params=pltpu.CompilerParams(
            dimension_semantics=("parallel", "parallel"),
            vmem_limit_bytes=vmem_limit_bytes,
        ),
        cost_estimate=cost,
    )(*args)

    total = jnp.sum(partials)             # tiny f32 reduction in plain JAX
    if size_average:
        return total / jnp.float32(n * hw)
    return total


def focal_loss_ref(x, target, *, gamma=0.0, alpha=None, size_average=True):
    """Pure-JAX reference mirroring the PyTorch module."""
    n, c = x.shape[0], x.shape[1]
    x2 = x.reshape(n, c, -1).transpose(0, 2, 1).reshape(-1, c).astype(jnp.float32)
    t = target.reshape(-1).astype(jnp.int32)
    logsm = jax.nn.log_softmax(x2, axis=-1)
    log_pt = jnp.take_along_axis(logsm, t[:, None], axis=1)[:, 0]
    pt = jnp.exp(log_pt)
    if alpha is not None:
        if isinstance(alpha, (float, int)):
            a = jnp.array([alpha, 1.0 - alpha], dtype=jnp.float32)
        else:
            a = jnp.asarray(alpha, dtype=jnp.float32)
        log_pt = log_pt * a[t]
    loss = -1.0 * (1.0 - pt) ** gamma * log_pt
    return loss.mean() if size_average else loss.sum()


if __name__ == "__main__":
    key = jax.random.PRNGKey(0)
    kx, kt, kx3, kt3 = jax.random.split(key, 4)

    N, C, H, W = 2, 4, 16, 16
    x = jax.random.normal(kx, (N, C, H, W), dtype=jnp.float32)
    target = jax.random.randint(kt, (N, H, W), 0, C, dtype=jnp.int32)

    # Case 1: gamma=2 (integer fast-path), per-class alpha, mean reduction.
    gamma = 2.0
    alpha = [0.25, 0.25, 0.25, 0.25]
    out = jax.block_until_ready(
        focal_loss(x, target, gamma=gamma, alpha=alpha, size_average=True))
    ref = focal_loss_ref(x, target, gamma=gamma, alpha=alpha, size_average=True)
    assert jnp.allclose(out, ref, atol=1e-5, rtol=1e-5), (out, ref)

    # Case 2: gamma=0, no alpha (alpha gather elided), sum reduction.
    out2 = jax.block_until_ready(
        focal_loss(x, target, gamma=0.0, alpha=None, size_average=False))
    ref2 = focal_loss_ref(x, target, gamma=0.0, alpha=None, size_average=False)
    assert jnp.allclose(out2, ref2, atol=1e-4, rtol=1e-5), (out2, ref2)

    # Case 3: single batch + HW not a multiple of the tile -> exercises the
    # ragged-last-tile lane mask and the >=2-grid-cell split.
    N3, C3, H3, W3 = 1, 4, 24, 24            # HW = 576
    xr = jax.random.normal(kx3, (N3, C3, H3, W3), dtype=jnp.float32)
    tr = jax.random.randint(kt3, (N3, H3, W3), 0, C3, dtype=jnp.int32)
    out3 = jax.block_until_ready(
        focal_loss(xr, tr, gamma=2.0, alpha=None, size_average=True,
                   block_bytes=4096))        # tiny blocks force 128-lane tiles
    ref3 = focal_loss_ref(xr, tr, gamma=2.0, alpha=None, size_average=True)
    assert jnp.allclose(out3, ref3, atol=1e-5, rtol=1e-5), (out3, ref3)

    print("KERNEL_OK")
</pallas_src>

<mosaic_0001>
module attributes {stable_mosaic.version = 11 : i64} {
  func.func @_focal_loss_kernel(%arg0: i32, %arg1: i32, %arg2: memref<1x4x256xf32, #tpu.memory_space<vmem>>, %arg3: memref<1x1x256xi8, #tpu.memory_space<vmem>>, %arg4: memref<4x1xf32, #tpu.memory_space<vmem>>, %arg5: memref<1x1x1x1xf32, #tpu.memory_space<vmem>>) attributes {dimension_semantics = [#tpu.dimension_semantics<parallel>, #tpu.dimension_semantics<parallel>], iteration_bounds = array<i64: 2, 1>, scalar_prefetch = 0 : i64, scratch_operands = 0 : i64, tpu.core_type = #tpu.core_type<tc>, window_params = [{transform_indices = @transform_0, window_bounds = array<i64: 1, 4, 256>}, {transform_indices = @transform_1, window_bounds = array<i64: 1, 1, 256>}, {pipeline_mode = #tpu.pipeline_mode<synchronous>, transform_indices = @transform_2, window_bounds = array<i64: 4, 1>}, {transform_indices = @transform_3, window_bounds = array<i64: 1, 1, 1, 1>}]} {
    %c0 = arith.constant 0 : index
    %c0_0 = arith.constant 0 : index
    %c0_1 = arith.constant 0 : index
    %0 = vector.load %arg2[%c0, %c0_0, %c0_1] : memref<1x4x256xf32, #tpu.memory_space<vmem>>, vector<1x4x256xf32>
    %1 = vector.shape_cast %0 : vector<1x4x256xf32> to vector<4x256xf32>
    %c0_2 = arith.constant 0 : index
    %c0_3 = arith.constant 0 : index
    %c0_4 = arith.constant 0 : index
    %2 = vector.load %arg3[%c0_2, %c0_3, %c0_4] : memref<1x1x256xi8, #tpu.memory_space<vmem>>, vector<1x1x256xi8>
    %3 = vector.shape_cast %2 : vector<1x1x256xi8> to vector<1x256xi8>
    %4 = arith.extsi %3 : vector<1x256xi8> to vector<1x256xi32>
    %cst = arith.constant dense<0xFF800000> : vector<256xf32>
    %5 = vector.multi_reduction <maximumf>, %1, %cst [0] : vector<4x256xf32> to vector<256xf32>
    %6 = vector.shape_cast %5 : vector<256xf32> to vector<1x256xf32>
    %7 = vector.broadcast %6 : vector<1x256xf32> to vector<4x256xf32>
    %8 = arith.subf %1, %7 : vector<4x256xf32>
    %9 = math.exp %8 : vector<4x256xf32>
    %cst_5 = arith.constant dense<0.000000e+00> : vector<256xf32>
    %10 = vector.multi_reduction <add>, %9, %cst_5 [0] : vector<4x256xf32> to vector<256xf32>
    %11 = vector.shape_cast %10 : vector<256xf32> to vector<1x256xf32>
    %12 = math.log %11 : vector<1x256xf32>
    %13 = tpu.iota {dimensions = array<i32: 0>} : vector<4x256xi32>
    %14 = vector.broadcast %4 : vector<1x256xi32> to vector<4x256xi32>
    %15 = arith.cmpi eq, %13, %14 : vector<4x256xi32>
    %cst_6 = arith.constant 0.000000e+00 : f32
    %16 = vector.broadcast %cst_6 : f32 to vector<4x256xf32>
    %17 = arith.select %15, %8, %16 : vector<4x256xi1>, vector<4x256xf32>
    %cst_7 = arith.constant dense<0.000000e+00> : vector<256xf32>
    %18 = vector.multi_reduction <add>, %17, %cst_7 [0] : vector<4x256xf32> to vector<256xf32>
    %19 = vector.shape_cast %18 : vector<256xf32> to vector<1x256xf32>
    %20 = arith.subf %19, %12 : vector<1x256xf32>
    %21 = math.exp %20 : vector<1x256xf32>
    %c0_8 = arith.constant 0 : index
    %c0_9 = arith.constant 0 : index
    %22 = vector.load %arg4[%c0_8, %c0_9] : memref<4x1xf32, #tpu.memory_space<vmem>>, vector<4x1xf32>
    %cst_10 = arith.constant 0.000000e+00 : f32
    %23 = vector.shape_cast %22 : vector<4x1xf32> to vector<4x1xf32>
    %24 = vector.broadcast %23 : vector<4x1xf32> to vector<4x256xf32>
    %25 = vector.broadcast %cst_10 : f32 to vector<4x256xf32>
    %26 = arith.select %15, %24, %25 : vector<4x256xi1>, vector<4x256xf32>
    %cst_11 = arith.constant dense<0.000000e+00> : vector<256xf32>
    %27 = vector.multi_reduction <add>, %26, %cst_11 [0] : vector<4x256xf32> to vector<256xf32>
    %28 = vector.shape_cast %27 : vector<256xf32> to vector<1x256xf32>
    %29 = arith.mulf %20, %28 : vector<1x256xf32>
    %cst_12 = arith.constant 1.000000e+00 : f32
    %30 = vector.broadcast %cst_12 : f32 to vector<1x256xf32>
    %31 = arith.subf %30, %21 : vector<1x256xf32>
    %32 = arith.mulf %31, %31 : vector<1x256xf32>
    %cst_13 = arith.constant 0.000000e+00 : f32
    %33 = vector.broadcast %cst_13 : f32 to vector<1x256xf32>
    %34 = arith.subf %33, %32 : vector<1x256xf32>
    %35 = arith.mulf %34, %29 : vector<1x256xf32>
    %36 = vector.shape_cast %35 : vector<1x256xf32> to vector<1x1x256xf32>
    %cst_14 = arith.constant dense<0.000000e+00> : vector<1xf32>
    %37 = vector.multi_reduction <add>, %36, %cst_14 [1, 2] : vector<1x1x256xf32> to vector<1xf32>
    %38 = vector.shape_cast %37 : vector<1xf32> to vector<1x1x1xf32>
    %39 = vector.extract %38[0, 0, 0] : f32 from vector<1x1x1xf32>
    %40 = vector.broadcast %39 : f32 to vector<1x1x1x1xf32>
    %c0_15 = arith.constant 0 : index
    %c0_16 = arith.constant 0 : index
    %c0_17 = arith.constant 0 : index
    %c0_18 = arith.constant 0 : index
    %41 = vector.load %arg5[%c0_15, %c0_16, %c0_17, %c0_18] : memref<1x1x1x1xf32, #tpu.memory_space<vmem>>, vector<1x1x1x1xf32>
    tpu.vector_store %arg5[%c0_15, %c0_16, %c0_17, %c0_18], %40 {strides = array<i32>} : memref<1x1x1x1xf32, #tpu.memory_space<vmem>>, vector<1x1x1x1xf32>,
    return
  }
  func.func @transform_0(%arg0: i32, %arg1: i32) -> (i32, i32, i32) {
    %c0_i32 = arith.constant 0 : i32
    %c0_i32_0 = arith.constant 0 : i32
    return %arg0, %c0_i32, %arg1 : i32, i32, i32
  }
  func.func @transform_1(%arg0: i32, %arg1: i32) -> (i32, i32, i32) {
    %c0_i32 = arith.constant 0 : i32
    %c0_i32_0 = arith.constant 0 : i32
    return %arg0, %c0_i32, %arg1 : i32, i32, i32
  }
  func.func @transform_2(%arg0: i32, %arg1: i32) -> (i32, i32) {
    %c0_i32 = arith.constant 0 : i32
    %c0_i32_0 = arith.constant 0 : i32
    %c0_i32_1 = arith.constant 0 : i32
    return %c0_i32, %c0_i32_0 : i32, i32
  }
  func.func @transform_3(%arg0: i32, %arg1: i32) -> (i32, i32, i32, i32) {
    %c0_i32 = arith.constant 0 : i32
    %c0_i32_0 = arith.constant 0 : i32
    %c0_i32_1 = arith.constant 0 : i32
    return %arg0, %arg1, %c0_i32, %c0_i32_0 : i32, i32, i32, i32
  }
}

</mosaic_0001>

<llo_original>
// kernel: tpu_custom_call.1
$region0: #{tpu_custom_call.1}
  #allocation0 [shape = 'u32[]', space=smem, size = 0x4, offset = 0x4, fixed_abs, tag = 'smem constant byte address 0x4 - core index']
  #allocation1 [shape = 'u32[144,128]{1,0:T(1,128)}', space=vmem, size = 0x12000, scoped, tag = 'internal scratch']
  %s0 = inlined_call_operand.hbm [shape: f32[2,4,256], index: 0, kind: input, shape index: {}]
  %s1 = inlined_call_operand.vmem [shape: s8[2,1,256], index: 1, kind: input, shape index: {}]
  %s2 = inlined_call_operand.vmem [shape: f32[4,1], index: 2, kind: input, shape index: {}]
  %s3 = inlined_call_operand.vmem [shape: f32[2,1,1,1], index: 3, kind: output, shape index: {}]
  %s4 = sld [smem:[#allocation0]]
  $region49: #{tpu_custom_call.1} parent=0
    _
  %s6 = ssub.s32 1, %s4
  %s7 = scalar_select 0, %s6, %s4
  $region1: #{tpu_custom_call.1} parent=0
    #allocation2 [shape = 'u8[8192]{0}', space=vmem, size = 0x2000, scoped, tag = 'input window, operand 0']
    #allocation3 [shape = 's32[2]{0}', space=sflag, size = 0x8, scoped, tag = 'scoped memory for tpu_custom_call.1']
    %8 = vsyncpa [#allocation3], 0
    %s9 = scalar_lea.sflag [#allocation3], 1
    %10 = vsyncpa %s9, 0
    loop: start=0, step=1, limit=4
    $region2: #{tpu_custom_call.1} parent=1 // loop_pre_header
      _
    $region3: #{tpu_custom_call.1} parent=1 // loop_header
      %s12 = sphi 0, %s16
      %p13 = scmp.ge.s32.totalorder %s12, 4
      %s19 = sphi 0, %s31
      %s20 = sphi 0, %s27
      %s21 = sphi 0, %s19
      %s22 = sphi 0, %s20
      %s23 = sphi 0, %s21
      %s24 = sphi 0, %s22
      %s36 = sphi 0, %s38
      %s39 = sphi 0, %s36
      %s40 = sphi 0, %s39
      %s56 = sphi 0, %s40
      %s64 = sphi 0, %s66
      %s67 = sphi 0, %s64
      %s68 = sphi 0, %s67
      %s84 = sphi 0, %s68
      %s88 = sphi 0, %s88
      %s90 = sphi 0, %s88
      %s91 = sphi 0, %s90
      %s105 = sphi 0, %s91
      %s113 = sphi 0, %s115
      %s116 = sphi 0, %s113
      %s117 = sphi 0, %s116
      %s133 = sphi 0, %s117
    $region4: #{tpu_custom_call.1} parent=1 // loop_header_branch
      %15 = sbr.rel (%p13) target = $region8
    $region5: #{tpu_custom_call.1} parent=1 // loop_body
      %s17 = ssub.s32 %s12, 1
      %s18 = ssub.s32 %s12, 2
      %s25 = sadd.s32 1, %s20
      %p26 = scmp.ge.s32.totalorder %s25, 1
      %s27 = scalar_select %p26, 0, %s25
      %s28 = sadd.s32 1, %s19
      %s29 = scalar_select %p26, %s28, %s19
      %p30 = scmp.ge.s32.totalorder %s29, 2
      %s31 = scalar_select %p30, 0, %s29
      %s32 = ssub.s32 %s19, %s31
      %s33 = ssub.s32 %s20, %s27
      %s34 = sor.u32 %s32, %s33
      %p35 = scmp.eq.s32.totalorder %s34, 0
      %s37 = sadd.s32 %s36, 1
      %s38 = scalar_select %p35, %s36, %s37
      %p41 = pneg %p35
      %p42 = scmp.eq.s32.totalorder %s12, 1
      %p43 = por %p41, %p42
      %p44 = scmp.ne.s32.totalorder %s36, %s39
      %p45 = scmp.eq.s32.totalorder %s12, 0
      %p46 = por %p44, %p45
      %p47 = scmp.ne.s32.totalorder %s36, %s39
      %p48 = scmp.eq.s32.totalorder %s17, 1
      %p49 = por %p47, %p48
      %p50 = scmp.ne.s32.totalorder %s39, %s40
      %p51 = scmp.eq.s32.totalorder %s17, 0
      %p52 = por %p50, %p51
      %p53 = scmp.ne.s32.totalorder %s39, %s40
      %p54 = scmp.eq.s32.totalorder %s18, 1
      %p55 = por %p53, %p54
      %p57 = scmp.ne.s32.totalorder %s40, %s56
      %p58 = scmp.eq.s32.totalorder %s18, 0
      %p59 = por %p57, %p58
      %s60 = ssub.s32 %s19, %s31
      %s61 = ssub.s32 %s20, %s27
      %s62 = sor.u32 %s60, %s61
      %p63 = scmp.eq.s32.totalorder %s62, 0
      %s65 = sadd.s32 %s64, 1
      %s66 = scalar_select %p63, %s64, %s65
      %p69 = pneg %p63
      %p70 = scmp.eq.s32.totalorder %s12, 1
      %p71 = por %p69, %p70
      %p72 = scmp.ne.s32.totalorder %s64, %s67
      %p73 = scmp.eq.s32.totalorder %s12, 0
      %p74 = por %p72, %p73
      %p75 = scmp.ne.s32.totalorder %s64, %s67
      %p76 = scmp.eq.s32.totalorder %s17, 1
      %p77 = por %p75, %p76
      %p78 = scmp.ne.s32.totalorder %s67, %s68
      %p79 = scmp.eq.s32.totalorder %s17, 0
      %p80 = por %p78, %p79
      %p81 = scmp.ne.s32.totalorder %s67, %s68
      %p82 = scmp.eq.s32.totalorder %s18, 1
      %p83 = por %p81, %p82
      %p85 = scmp.ne.s32.totalorder %s68, %s84
      %p86 = scmp.eq.s32.totalorder %s18, 0
      %p87 = por %p85, %p86
      %s89 = sadd.s32 %s88, 1
      %p92 = scmp.eq.s32.totalorder %s12, 1
      %p93 = scmp.ne.s32.totalorder %s88, %s90
      %p94 = scmp.eq.s32.totalorder %s12, 0
      %p95 = por %p93, %p94
      %p96 = scmp.ne.s32.totalorder %s88, %s90
      %p97 = scmp.eq.s32.totalorder %s17, 1
      %p98 = por %p96, %p97
      %p99 = scmp.ne.s32.totalorder %s90, %s91
      %p100 = scmp.eq.s32.totalorder %s17, 0
      %p101 = por %p99, %p100
      %p102 = scmp.ne.s32.totalorder %s90, %s91
      %p103 = scmp.eq.s32.totalorder %s18, 1
      %p104 = por %p102, %p103
      %p106 = scmp.ne.s32.totalorder %s91, %s105
      %p107 = scmp.eq.s32.totalorder %s18, 0
      %p108 = por %p106, %p107
      %s109 = ssub.s32 %s19, %s31
      %s110 = ssub.s32 %s20, %s27
      %s111 = sor.u32 %s109, %s110
      %p112 = scmp.eq.s32.totalorder %s111, 0
      %s114 = sadd.s32 %s113, 1
      %s115 = scalar_select %p112, %s113, %s114
      %p118 = pneg %p112
      %p119 = scmp.eq.s32.totalorder %s12, 1
      %p120 = por %p118, %p119
      %p121 = scmp.ne.s32.totalorder %s113, %s116
      %p122 = scmp.eq.s32.totalorder %s12, 0
      %p123 = por %p121, %p122
      %p124 = scmp.ne.s32.totalorder %s113, %s116
      %p125 = scmp.eq.s32.totalorder %s17, 1
      %p126 = por %p124, %p125
      %p127 = scmp.ne.s32.totalorder %s116, %s117
      %p128 = scmp.eq.s32.totalorder %s17, 0
      %p129 = por %p127, %p128
      %p130 = scmp.ne.s32.totalorder %s116, %s117
      %p131 = scmp.eq.s32.totalorder %s18, 1
      %p132 = por %p130, %p131
      %p134 = scmp.ne.s32.totalorder %s117, %s133
      %p135 = scmp.eq.s32.totalorder %s18, 0
      %p136 = por %p134, %p135
      %p137 = scmp.le.s32.totalorder 1, %s12
      %p138 = scmp.lt.s32.totalorder %s12, 3
      %p139 = pnand %p137, %p138
      %p140 = pneg %p139
      // Predicated region
      $region9: #{tpu_custom_call.1} parent=5 // pred_check
        _
      $region10: #{tpu_custom_call.1} parent=5 // pred_check_branch
        %142 = sbr.rel (%p139) target = $region12
      $region11: #{tpu_custom_call.1} parent=5 // pred_region
        %s143 = ssub.s32 %s12, 1
        // Predicated region
        $region13: #{tpu_custom_call.1} parent=11 // pred_check
          %p144 = pneg %p101
        $region14: #{tpu_custom_call.1} parent=11 // pred_check_branch
          %146 = sbr.rel (%p144) target = $region16
        $region15: #{tpu_custom_call.1} parent=11 // pred_region
          _
        $region16: #{tpu_custom_call.1} parent=11 // pred_fallthru
          _
      $region12: #{tpu_custom_call.1} parent=5 // pred_fallthru
        _
      %p147 = scmp.lt.s32.totalorder %s12, 2
      // Predicated region
      $region17: #{tpu_custom_call.1} parent=5 // pred_check
        %p148 = pneg %p147
      $region18: #{tpu_custom_call.1} parent=5 // pred_check_branch
        %150 = sbr.rel (%p148) target = $region20
      $region19: #{tpu_custom_call.1} parent=5 // pred_region
        // Predicated region
        $region21: #{tpu_custom_call.1} parent=19 // pred_check
          %p151 = pneg %p46
        $region22: #{tpu_custom_call.1} parent=19 // pred_check_branch
          %153 = sbr.rel (%p151) target = $region24
        $region23: #{tpu_custom_call.1} parent=19 // pred_region
          %s154 = sand.u32 %s36, 1
          %s155 = scalar_lea.sflag [#allocation3], %s154
          %s156 = sand.u32 %s36, 1
          %s157 = smul.addr %s156, 8
          %s158 = scalar_lea.vmem [#allocation2], %s157
          %s159 = smul.u32 2, %s20
          %s161 = ssub.s32 128, 128
          %162 = vsyncadd %s155, %s161
          %s163 = smul.addr %s19, 2
          %s164 = sadd.s32 %s159, %s163
          %s165 = smul.addr %s164, 64
          %s166 = scalar_lea.hbm %s0, %s165
          %s168 = sshll.u32 %s158, 4
          %s169 = int_to_ptr.vmem [resolvable:$true] %s168
          %171 = dma.hbm_to_vmem [thread:$0]  %s166, 128, %s169, %s155
        $region24: #{tpu_custom_call.1} parent=19 // pred_fallthru
          _
        // Predicated region
        $region25: #{tpu_custom_call.1} parent=19 // pred_check
          %p172 = pneg %p74
        $region26: #{tpu_custom_call.1} parent=19 // pred_check_branch
          %174 = sbr.rel (%p172) target = $region28
        $region27: #{tpu_custom_call.1} parent=19 // pred_region
          %s175 = smul.u32 2, %s20
          %p176 = scmp.lt.s32.totalorder %s19, 1
          %s177 = scalar_select %p176, %s19, 1
          %p178 = scmp.lt.s32.totalorder %s175, 1
          %s179 = scalar_select %p178, %s175, 1
          %s180 = smul.addr %s177, 2
          %s181 = sadd.s32 %s179, %s180
          %s182 = scalar_lea.vmem %s1, %s181
          %s183 = smul.u32 2, %s20
        $region28: #{tpu_custom_call.1} parent=19 // pred_fallthru
          _
      $region20: #{tpu_custom_call.1} parent=5 // pred_fallthru
        _
      %p184 = scmp.le.s32.totalorder 1, %s12
      %p185 = scmp.lt.s32.totalorder %s12, 3
      %p186 = pnand %p184, %p185
      %p187 = pneg %p186
      // Predicated region
      $region29: #{tpu_custom_call.1} parent=5 // pred_check
        _
      $region30: #{tpu_custom_call.1} parent=5 // pred_check_branch
        %189 = sbr.rel (%p186) target = $region32
      $region31: #{tpu_custom_call.1} parent=5 // pred_region
        %s190 = ssub.s32 %s12, 1
        %s191 = sand.u32 %s39, 1
        %s192 = scalar_lea.sflag [#allocation3], %s191
        %s193 = sand.u32 %s39, 1
        %s194 = smul.addr %s193, 8
        %s195 = scalar_lea.vmem [#allocation2], %s194
        // Predicated region
        $region33: #{tpu_custom_call.1} parent=31 // pred_check
          %p196 = pneg %p52
        $region34: #{tpu_custom_call.1} parent=31 // pred_check_branch
          %198 = sbr.rel (%p196) target = $region36
        $region35: #{tpu_custom_call.1} parent=31 // pred_region
          %199 = dma.done %s192, 128
        $region36: #{tpu_custom_call.1} parent=31 // pred_fallthru
          _
        %s200 = sand.u32 %s39, 1
        %s201 = scalar_lea.sflag [#allocation3], %s200
        %s202 = sand.u32 %s39, 1
        %s203 = smul.addr %s202, 8
        %s204 = scalar_lea.vmem [#allocation2], %s203
        %p205 = pneg %p52
        %p206 = pneg %p49
        %s207 = smul.u32 2, %s22
        %p208 = scmp.lt.s32.totalorder %s21, 1
        %s209 = scalar_select %p208, %s21, 1
        %p210 = scmp.lt.s32.totalorder %s207, 1
        %s211 = scalar_select %p210, %s207, 1
        %s212 = smul.addr %s209, 2
        %s213 = sadd.s32 %s211, %s212
        %s214 = scalar_lea.vmem %s1, %s213
        %p215 = pneg %p80
        %p216 = pneg %p77
        %p217 = pneg %p101
        %p218 = pneg %p98
        %p219 = pneg %p129
        %p220 = pneg %p126
        %p221 = scmp.lt.s32.totalorder %s21, 1
        %s222 = scalar_select %p221, %s21, 1
        %p223 = scmp.lt.s32.totalorder %s22, 0
        %s224 = scalar_select %p223, %s22, 0
        %s225 = sadd.s32 %s224, %s222
        %s226 = scalar_lea.vmem %s3, %s225
        %s227 = smul.u32 2, %s22
        %s228 = smul.u32 2, %s22
        %p229 = scmp.lt.s32.totalorder %s21, 1
        %s230 = scalar_select %p229, %s21, 1
        %p231 = scmp.lt.s32.totalorder %s228, 1
        %s232 = scalar_select %p231, %s228, 1
        %s233 = smul.addr %s230, 2
        %s234 = sadd.s32 %s232, %s233
        %s235 = scalar_lea.vmem %s1, %s234
        %s236 = smul.u32 2, %s22
        %p237 = scmp.lt.s32.totalorder %s21, 1
        %s238 = scalar_select %p237, %s21, 1
        %p239 = scmp.lt.s32.totalorder %s22, 0
        %s240 = scalar_select %p239, %s22, 0
        %s241 = sadd.s32 %s240, %s238
        %s242 = scalar_lea.vmem %s3, %s241
        %v243 = vld [vmem:[%s195] sm:$0xff]
        %v244 = vld [vmem:[%s235] sm:$0x3]
        %v245 = vunpack.c.0.s8 %v244
        %v247 = vcombine.high %v243, %v243
        %vm249 = vcmask 1043456
        %v250 = vsel %vm249, %v243, -inf
        %v251 = vrot.slane %v250, 4
        %v252 = vmax.f32 %v250, %v251
        %v253 = vrot.slane %v252, 2
        %v254 = vmax.f32 %v252, %v253
        %v255 = vrot.slane %v254, 1
        %v256 = vmax.f32 %v254, %v255
        %v257 = vsel %vm249, %v247, -inf
        %v258 = vrot.slane %v257, 4
        %v259 = vmax.f32 %v257, %v258
        %v260 = vrot.slane %v259, 2
        %v261 = vmax.f32 %v259, %v260
        %v262 = vrot.slane %v261, 1
        %v263 = vmax.f32 %v261, %v262
        %v266 = vcombine.low %v256, %v263
        %v268 = vsub.f32 %v243, %v266
        %v269 = vmul.f32 %v268, 1.442695
        %v270 = vpow.pop %v269
        %v272 = vcombine.high %v270, %v270
        %v274 = vsel %vm249, %v270, 0.0
        %v275 = vrot.slane %v274, 4
        %v276 = vadd.f32 %v274, %v275
        %v277 = vrot.slane %v276, 2
        %v278 = vadd.f32 %v276, %v277
        %v279 = vrot.slane %v278, 1
        %v280 = vadd.f32 %v278, %v279
        %v281 = vsel %vm249, %v272, 0.0
        %v282 = vrot.slane %v281, 4
        %v283 = vadd.f32 %v281, %v282
        %v284 = vrot.slane %v283, 2
        %v285 = vadd.f32 %v283, %v284
        %v286 = vrot.slane %v285, 1
        %v287 = vadd.f32 %v285, %v286
        %v288 = vlog2.pop %v280
        %v289 = vmul.f32 %v288, 0.6931472
        %v290 = vlog2.pop %v287
        %v291 = vmul.f32 %v290, 0.6931472
        %v292 = vlaneseq
        %v293 = vshrl.u32 %v292, 7
        %v294 = vlaneseq
        %v295 = vshrl.u32 %v294, 7
        %v296 = vsub.s32 0, %v295
        %v297 = vrot.slane %v245, %v296
        %v298 = vlaneseq
        %v299 = vshrl.u32 %v298, 7
        %v300 = vsub.s32 4, %v299
        %v301 = vrot.slane %v245, %v300
        %v302 = vlaneseq
        %v303 = vshrl.u32 %v302, 7
        %v304 = vsub.s32 0, %v303
        %v305 = vrot.slane %v297, %v304
        %v306 = vlaneseq
        %v307 = vshrl.u32 %v306, 7
        %v308 = vsub.s32 0, %v307
        %v309 = vrot.slane %v301, %v308
        %vm310 = vcmp.eq.s32.totalorder %v293, %v305
        %vm311 = vcmp.eq.s32.totalorder %v293, %v309
        %v313 = vcombine.high %v268, %v268
        %v315 = vsel %vm310, %v268, 0.0
        %v316 = vsel %vm311, %v313, 0.0
        %v317 = vsel %vm249, %v315, 0.0
        %v318 = vrot.slane %v317, 4
        %v319 = vadd.f32 %v317, %v318
        %v320 = vrot.slane %v319, 2
        %v321 = vadd.f32 %v319, %v320
        %v322 = vrot.slane %v321, 1
        %v323 = vadd.f32 %v321, %v322
        %v324 = vsel %vm249, %v316, 0.0
        %v325 = vrot.slane %v324, 4
        %v326 = vadd.f32 %v324, %v325
        %v327 = vrot.slane %v326, 2
        %v328 = vadd.f32 %v326, %v327
        %v329 = vrot.slane %v328, 1
        %v330 = vadd.f32 %v328, %v329
        %v331 = vsub.f32 %v323, %v289
        %v332 = vsub.f32 %v330, %v291
        %v333 = vmul.f32 %v331, 1.442695
        %v334 = vpow.pop %v333
        %v335 = vmul.f32 %v332, 1.442695
        %v336 = vpow.pop %v335
        %v337 = vld [vmem:[%s2] sm:$0xf]
        %339 = vset.pattern.permute.xlu0 0
        %340 = vperm.xlu0 %339, %v337
        %v341 = vpop.permute.xlu0 %340
        %v343 = vsel %vm310, %v341, 0.0
        %v344 = vsel %vm311, %v341, 0.0
        %v345 = vsel %vm249, %v343, 0.0
        %v346 = vrot.slane %v345, 4
        %v347 = vadd.f32 %v345, %v346
        %v348 = vrot.slane %v347, 2
        %v349 = vadd.f32 %v347, %v348
        %v350 = vrot.slane %v349, 1
        %v351 = vadd.f32 %v349, %v350
        %v352 = vsel %vm249, %v344, 0.0
        %v353 = vrot.slane %v352, 4
        %v354 = vadd.f32 %v352, %v353
        %v355 = vrot.slane %v354, 2
        %v356 = vadd.f32 %v354, %v355
        %v357 = vrot.slane %v356, 1
        %v358 = vadd.f32 %v356, %v357
        %v359 = vmul.f32 %v331, %v351
        %v360 = vmul.f32 %v332, %v358
        %v361 = vsub.f32 1.0, %v334
        %v362 = vsub.f32 1.0, %v336
        %v363 = vmul.f32 %v361, %v361
        %v364 = vmul.f32 %v362, %v362
        %v365 = vsub.f32 0.0, %v363
        %v366 = vsub.f32 0.0, %v364
        %v367 = vmul.f32 %v365, %v359
        %v368 = vmul.f32 %v366, %v360
        %vm369 = vcmask 1040384
        %v370 = vsel %vm369, %v367, 0.0
        %v371 = vsel %vm369, %v368, 0.0
        %v372 = vadd.f32 %v370, %v371
        %373 = vadd.xlane.f32.xlu0 %v372
        %v374 = vpop.xlane.xlu0 %373
        %v375 = vrot.slane %v374, 4
        %v376 = vadd.f32 %v374, %v375
        %v377 = vrot.slane %v376, 2
        %v378 = vadd.f32 %v376, %v377
        %v379 = vrot.slane %v378, 1
        %v380 = vadd.f32 %v378, %v379
        %s381 = vtos %v380
        %v382 = vstv %s381
        %vm383 = vcmask 0
        %384 = vst.msk [vmem:[%s242] sm:$0x1] %vm383, %v382
        %p385 = scmp.lt.s32.totalorder %s21, 1
        %s386 = scalar_select %p385, %s21, 1
        %p387 = scmp.lt.s32.totalorder %s22, 0
        %s388 = scalar_select %p387, %s22, 0
        %s389 = sadd.s32 %s388, %s386
        %s390 = scalar_lea.vmem %s3, %s389
        // Predicated region
        $region37: #{tpu_custom_call.1} parent=31 // pred_check
          %p391 = pneg %p126
        $region38: #{tpu_custom_call.1} parent=31 // pred_check_branch
          %393 = sbr.rel (%p391) target = $region40
        $region39: #{tpu_custom_call.1} parent=31 // pred_region
          _
        $region40: #{tpu_custom_call.1} parent=31 // pred_fallthru
          _
      $region32: #{tpu_custom_call.1} parent=5 // pred_fallthru
        _
      %p394 = scmp.le.s32.totalorder 2, %s12
      // Predicated region
      $region41: #{tpu_custom_call.1} parent=5 // pred_check
        %p395 = pneg %p394
      $region42: #{tpu_custom_call.1} parent=5 // pred_check_branch
        %397 = sbr.rel (%p395) target = $region44
      $region43: #{tpu_custom_call.1} parent=5 // pred_region
        %s398 = ssub.s32 %s12, 2
        // Predicated region
        $region45: #{tpu_custom_call.1} parent=43 // pred_check
          %p399 = pneg %p132
        $region46: #{tpu_custom_call.1} parent=43 // pred_check_branch
          %401 = sbr.rel (%p399) target = $region48
        $region47: #{tpu_custom_call.1} parent=43 // pred_region
          %p402 = scmp.lt.s32.totalorder %s23, 1
          %s403 = scalar_select %p402, %s23, 1
          %p404 = scmp.lt.s32.totalorder %s24, 0
          %s405 = scalar_select %p404, %s24, 0
          %s406 = sadd.s32 %s405, %s403
          %s407 = scalar_lea.vmem %s3, %s406
        $region48: #{tpu_custom_call.1} parent=43 // pred_fallthru
          _
      $region44: #{tpu_custom_call.1} parent=5 // pred_fallthru
        _
    $region6: #{tpu_custom_call.1} parent=1 // loop_footer
      %s16 = sadd.s32 1, %s12
    $region7: #{tpu_custom_call.1} parent=1 // loop_footer_branch
      %11 = sbr.rel target = $region3
    $region8: #{tpu_custom_call.1} parent=1 // loop_exit
      _
    %408 = vsyncpa [#allocation3], 1
    %s409 = scalar_lea.sflag [#allocation3], 1
    %410 = vsyncpa %s409, 1

</llo_original>
